<compile_context>
chip_gen: v6e
topology: v6e:2x2x1
jax: 0.10.0
libtpu: 0.0.40
codegen_flags: <defaults>
</compile_context>

<pallas_src>
import functools

import jax
import jax.numpy as jnp
from jax.experimental import pallas as pl
from jax.experimental.pallas import tpu as pltpu


def _round_up(v, m):
    return ((v + m - 1) // m) * m


# ----------------------------------------------------------------------------------
# Core Pallas kernel: O = act(A @ B + bias), M/K tiled, bf16 operands, f32 accumulate.
# ----------------------------------------------------------------------------------
def _mm_bias_act_kernel(a_ref, b_ref, bias_ref, o_ref, acc_ref, *, relu):
    k = pl.program_id(1)

    @pl.when(k == 0)
    def _():
        acc_ref[...] = jnp.zeros_like(acc_ref)

    acc_ref[...] += jnp.dot(a_ref[...], b_ref[...], preferred_element_type=jnp.float32)

    @pl.when(k == pl.num_programs(1) - 1)
    def _():
        r = acc_ref[...] + bias_ref[...]
        if relu:
            r = jnp.maximum(r, 0.0)
        o_ref[...] = r.astype(o_ref.dtype)


def matmul_bias_act(a, b, bias=None, *, relu=False, out_dtype=jnp.float32,
                    tile_m=256, trim_n=True):
    """A:[M,K] @ B:[K,N] + bias (optional ReLU). bf16 MXU operands, f32 accumulator.

    The output lane dim is padded up to a multiple of 128 (lane-dense stores); the
    M dimension is never padded/copied -- partial edge tiles use masked stores.
    """
    m, k = a.shape
    k2, n = b.shape
    assert k == k2, (a.shape, b.shape)
    n_pad = _round_up(n, 128)

    a = a.astype(jnp.bfloat16)
    b = b.astype(jnp.bfloat16)
    if n_pad != n:
        b = jnp.pad(b, ((0, 0), (0, n_pad - n)))
    if bias is None:
        bias2 = jnp.zeros((1, n_pad), jnp.float32)
    else:
        bias2 = jnp.pad(bias.astype(jnp.float32), (0, n_pad - n)).reshape(1, n_pad)

    tile_m = max(16, min(tile_m, _round_up(m, 16)))
    # K-tiling (bounded VMEM) only kicks in for large reductions, e.g. Cin=2048.
    if k >= 2048 and k % 256 == 0:
        tile_k = 512 if k % 512 == 0 else 256
    else:
        tile_k = k
    k_tiles = k // tile_k
    m_tiles = pl.cdiv(m, tile_m)

    out = pl.pallas_call(
        functools.partial(_mm_bias_act_kernel, relu=relu),
        out_shape=jax.ShapeDtypeStruct((m, n_pad), out_dtype),
        grid=(m_tiles, k_tiles),
        in_specs=[
            pl.BlockSpec((tile_m, tile_k), lambda i, kk: (i, kk)),
            pl.BlockSpec((tile_k, n_pad), lambda i, kk: (kk, 0)),
            pl.BlockSpec((1, n_pad), lambda i, kk: (0, 0)),
        ],
        out_specs=pl.BlockSpec((tile_m, n_pad), lambda i, kk: (i, 0)),
        scratch_shapes=[pltpu.VMEM((tile_m, n_pad), jnp.float32)],
        compiler_params=pltpu.CompilerParams(
            dimension_semantics=("parallel", "arbitrary")),
    )(a, b, bias2)
    if trim_n and n_pad != n:
        out = out[:, :n]
    return out


# ----------------------------------------------------------------------------------
# Global average pooling: in-kernel row reduction on the natural [N, H*W, C] layout.
# ----------------------------------------------------------------------------------
def _gap_kernel(x_ref, o_ref, *, inv_hw):
    t = pl.program_id(1)

    @pl.when(t == 0)
    def _():
        o_ref[...] = jnp.zeros_like(o_ref)

    o_ref[...] += jnp.sum(x_ref[...].astype(jnp.float32), axis=1, keepdims=True)

    @pl.when(t == pl.num_programs(1) - 1)
    def _():
        o_ref[...] = o_ref[...] * inv_hw


def global_avg_pool(x_nhwc):
    n, h, w, c = x_nhwc.shape
    hw = h * w
    xr = x_nhwc.reshape(n, hw, c)
    tile = hw
    if hw > 4096:  # stream big maps in chunks (divisor, multiple of 8)
        for cand in (4096, 2048, 1024, 512, 256, 128, 64, 32, 16, 8):
            if hw % cand == 0:
                tile = cand
                break
    out = pl.pallas_call(
        functools.partial(_gap_kernel, inv_hw=1.0 / hw),
        out_shape=jax.ShapeDtypeStruct((n, 1, c), jnp.float32),
        grid=(n, hw // tile),
        in_specs=[pl.BlockSpec((1, tile, c), lambda b, t: (b, t, 0))],
        out_specs=pl.BlockSpec((1, 1, c), lambda b, t: (b, 0, 0)),
        compiler_params=pltpu.CompilerParams(
            dimension_semantics=("parallel", "arbitrary")),
    )(xr)
    return out.reshape(n, c)


# ----------------------------------------------------------------------------------
# Fused ASPP projection: relu(sum_i b_i @ Wproj_i + per-batch bias), no 5C concat.
# ----------------------------------------------------------------------------------
def _make_aspp_proj_kernel(n_branches):
    def kernel(*refs):
        b_refs = refs[:n_branches]
        w_ref = refs[n_branches]          # (n_branches, C, n_pad)
        bias_ref = refs[n_branches + 1]   # (1, 1, n_pad)
        o_ref = refs[n_branches + 2]      # (1, tile_hw, n_pad)
        t_hw, n_pad = o_ref.shape[1], o_ref.shape[2]
        w_all = w_ref[...]
        acc = jnp.zeros((t_hw, n_pad), jnp.float32)
        for i, br in enumerate(b_refs):
            acc = acc + jnp.dot(br[0], w_all[i], preferred_element_type=jnp.float32)
        acc = acc + bias_ref[0]
        acc = jnp.maximum(acc, 0.0)
        o_ref[...] = acc[None].astype(o_ref.dtype)
    return kernel


def aspp_project(branches, w_chunks, bias_nb, n, h, w, out_dtype=jnp.bfloat16):
    """branches[i]: (n*h*w, C); bias_nb: (n, n_pad) f32 already containing the
    projection bias plus the image-pool branch contribution (pooled @ Wproj_4)."""
    cin = w_chunks[0].shape[0]
    cout = w_chunks[0].shape[1]
    n_pad = _round_up(cout, 128)
    nb = len(branches)
    hw = h * w
    brs = [br.reshape(n, hw, cin).astype(jnp.bfloat16) for br in branches]
    w_stack = jnp.stack(
        [jnp.pad(wc, ((0, 0), (0, n_pad - cout))) for wc in w_chunks[:nb]], axis=0
    ).astype(jnp.bfloat16)                                    # (nb, C, n_pad)
    bias3 = bias_nb.reshape(n, 1, n_pad).astype(jnp.float32)

    tile_hw = hw
    if hw > 2048:
        for cand in (2048, 1024, 512, 256, 128, 64, 32, 16, 8):
            if hw % cand == 0:
                tile_hw = cand
                break

    out = pl.pallas_call(
        _make_aspp_proj_kernel(nb),
        out_shape=jax.ShapeDtypeStruct((n, hw, n_pad), out_dtype),
        grid=(n, hw // tile_hw),
        in_specs=[pl.BlockSpec((1, tile_hw, cin), lambda b, t: (b, t, 0))
                  for _ in range(nb)]
                 + [pl.BlockSpec((nb, cin, n_pad), lambda b, t: (0, 0, 0)),
                    pl.BlockSpec((1, 1, n_pad), lambda b, t: (b, 0, 0))],
        out_specs=pl.BlockSpec((1, tile_hw, n_pad), lambda b, t: (b, t, 0)),
        compiler_params=pltpu.CompilerParams(
            dimension_semantics=("parallel", "parallel")),
    )(*brs, w_stack, bias3)
    return out[..., :cout].reshape(n, h, w, cout)


# ----------------------------------------------------------------------------------
# KxK conv with in-kernel tap gather (no im2col) over an implicit channel concat.
# ----------------------------------------------------------------------------------
def _make_conv_taps_kernel(n_inputs, taps, h, w, dilation, relu):
    def kernel(*refs):
        x_refs = refs[:n_inputs]
        w_refs = refs[n_inputs:2 * n_inputs]
        bias_ref = refs[2 * n_inputs]
        o_ref = refs[2 * n_inputs + 1]
        n_pad = o_ref.shape[-1]
        acc = jnp.zeros((h * w, n_pad), jnp.float32)
        for x_ref, w_ref in zip(x_refs, w_refs):
            xi = x_ref[0]                    # (Hp, Wp, Cin_i), resident in VMEM
            wi = w_ref[...]                  # (ntaps, Cin_i, n_pad)
            cin_i = xi.shape[-1]
            for t_idx, (ky, kx) in enumerate(taps):
                patch = xi[ky * dilation:ky * dilation + h,
                           kx * dilation:kx * dilation + w, :]
                acc = acc + jnp.dot(patch.reshape(h * w, cin_i), wi[t_idx],
                                    preferred_element_type=jnp.float32)
        acc = acc + bias_ref[...]
        if relu:
            acc = jnp.maximum(acc, 0.0)
        o_ref[...] = acc[None].astype(o_ref.dtype)
    return kernel


def conv2d_taps(inputs, weights, bias, *, dilation=1, relu=False,
                out_dtype=jnp.float32):
    """'Same'-padded KxK conv over the channel concat of `inputs` -- the concat is
    never materialised (each input gets its own weight slice).  Taps are gathered
    in-kernel from one spatially padded copy, so no 9x im2col tensor hits HBM, and
    taps whose receptive offset lies entirely in the zero padding are dropped."""
    kh, kw, _, cout = weights[0].shape
    n, h, w = inputs[0].shape[:3]
    ph, pw = dilation * (kh // 2), dilation * (kw // 2)
    taps = [(ky, kx) for ky in range(kh) for kx in range(kw)
            if abs((ky - kh // 2) * dilation) < h and abs((kx - kw // 2) * dilation) < w]
    n_pad = _round_up(cout, 128)

    xps, wts, x_specs, w_specs = [], [], [], []
    for xi, wi in zip(inputs, weights):
        ci = xi.shape[-1]
        xp = jnp.pad(xi, ((0, 0), (ph, ph), (pw, pw), (0, 0))).astype(jnp.bfloat16)
        xps.append(xp)
        x_specs.append(pl.BlockSpec((1, h + 2 * ph, w + 2 * pw, ci),
                                    lambda b: (b, 0, 0, 0)))
        wsel = jnp.stack([wi[ky, kx] for ky, kx in taps], axis=0)   # (ntaps, ci, cout)
        wsel = jnp.pad(wsel, ((0, 0), (0, 0), (0, n_pad - cout))).astype(jnp.bfloat16)
        wts.append(wsel)
        w_specs.append(pl.BlockSpec(wsel.shape, lambda b: (0, 0, 0)))
    bias_p = jnp.pad(bias.astype(jnp.float32), (0, n_pad - cout)).reshape(1, n_pad)
    in_specs = x_specs + w_specs + [pl.BlockSpec((1, n_pad), lambda b: (0, 0))]

    # TODO(synk): for large feature maps, add a spatial row-tile grid axis with a
    # halo DMA (pl.ANY + make_async_copy) instead of keeping the whole padded map
    # per batch element resident in VMEM.
    out = pl.pallas_call(
        _make_conv_taps_kernel(len(inputs), taps, h, w, dilation, relu),
        out_shape=jax.ShapeDtypeStruct((n, h * w, n_pad), out_dtype),
        grid=(n,),
        in_specs=in_specs,
        out_specs=pl.BlockSpec((1, h * w, n_pad), lambda b: (b, 0, 0)),
        compiler_params=pltpu.CompilerParams(dimension_semantics=("parallel",)),
    )(*xps, *wts, bias_p)
    return out[..., :cout].reshape(n, h, w, cout)


def aspp_branch_conv(x, w_hwio, bias, dilation):
    """One ASPP branch (Conv+BN+ReLU, BN folded).  A dilated 3x3 branch whose
    off-centre taps only ever see zero padding (dilation >= H and >= W) reduces
    exactly to a 1x1 conv with the centre tap -> plain matmul, no pad, no im2col."""
    n, h, w, cin = x.shape
    kh, kw, _, cout = w_hwio.shape
    taps = [(ky, kx) for ky in range(kh) for kx in range(kw)
            if abs((ky - kh // 2) * dilation) < h and abs((kx - kw // 2) * dilation) < w]
    if len(taps) == 1:
        ky, kx = taps[0]
        out = matmul_bias_act(x.reshape(n * h * w, cin), w_hwio[ky, kx], bias,
                              relu=True, out_dtype=jnp.bfloat16)
        return out                                               # (n*h*w, cout)
    out = conv2d_taps([x], [w_hwio], bias, dilation=dilation, relu=True,
                      out_dtype=jnp.bfloat16)
    return out.reshape(n * h * w, cout)


# ----------------------------------------------------------------------------------
# Bilinear interpolation (align_corners=False), separable matmul form.
# ----------------------------------------------------------------------------------
def bilinear_matrix(in_size, out_size):
    scale = in_size / out_size
    o = jnp.arange(out_size, dtype=jnp.float32)
    src = (o + 0.5) * scale - 0.5
    src = jnp.clip(src, 0.0, None)                 # PyTorch clamps negative source idx to 0
    i0 = jnp.clip(jnp.floor(src).astype(jnp.int32), 0, in_size - 1)
    i1 = jnp.clip(i0 + 1, 0, in_size - 1)
    frac = src - i0.astype(jnp.float32)
    rows = jnp.arange(out_size)
    r = jnp.zeros((out_size, in_size), jnp.float32)
    r = r.at[rows, i0].add(1.0 - frac)
    r = r.at[rows, i1].add(frac)
    return r


def bilinear_resize(x_nhwc, out_h, out_w):
    """F.interpolate(mode='bilinear', align_corners=False) as two separable resize
    matmuls (rows then cols) -- no dense Kronecker matrix."""
    n, h, w, c = x_nhwc.shape
    rh = bilinear_matrix(h, out_h)
    rw = bilinear_matrix(w, out_w)
    t = jnp.moveaxis(x_nhwc, 1, 0).reshape(h, n * w * c)
    t = matmul_bias_act(rh, t, out_dtype=jnp.bfloat16)            # (out_h, n*w*c)
    t = t.reshape(out_h, n, w, c)
    t = jnp.moveaxis(t, 2, 0).reshape(w, out_h * n * c)
    t = matmul_bias_act(rw, t, out_dtype=jnp.bfloat16)            # (out_w, out_h*n*c)
    t = t.reshape(out_w, out_h, n, c)
    return jnp.transpose(t, (2, 1, 0, 3))                         # (n, out_h, out_w, c)


# ----------------------------------------------------------------------------------
# DeepLabPlusHead forward pass.
# ----------------------------------------------------------------------------------
def deeplab_plus_head(x_nchw, low_nchw, params, out_channels):
    x = jnp.transpose(x_nchw, (0, 2, 3, 1)).astype(jnp.bfloat16)      # NCHW -> NHWC
    low = jnp.transpose(low_nchw, (0, 2, 3, 1)).astype(jnp.bfloat16)
    n, h, w, cin = x.shape
    _, hl, wl, _ = low.shape
    c = out_channels

    # --- ASPP branches (Conv+BN+ReLU; dilated branches collapse to 1x1 when d>=H,W) ---
    b0 = aspp_branch_conv(x, params["aspp_w0"], params["aspp_b0"], 1)
    b1 = aspp_branch_conv(x, params["aspp_w1"], params["aspp_b1"], 12)
    b2 = aspp_branch_conv(x, params["aspp_w2"], params["aspp_b2"], 24)
    b3 = aspp_branch_conv(x, params["aspp_w3"], params["aspp_b3"], 36)

    # --- image-pool branch: in-kernel global mean -> 1x1 conv -> folded into the
    #     projection bias (its spatial broadcast is constant per batch element) ---
    xm = global_avg_pool(x)                                            # (n, cin) f32
    pooled = matmul_bias_act(xm, params["aspp_wpool"], params["aspp_bpool"],
                             relu=True)                                # (n, c) f32
    w_proj = params["aspp_wproj"].reshape(5 * c, c)
    w_chunks = [w_proj[i * c:(i + 1) * c] for i in range(5)]
    bias_nb = matmul_bias_act(pooled, w_chunks[4], params["aspp_bproj"],
                              trim_n=False)                            # (n, n_pad) f32

    # --- fused ASPP 1x1 projection: relu(sum_i b_i @ Wproj_i + bias), no concat ---
    aspp_out = aspp_project([b0, b1, b2, b3], w_chunks[:4], bias_nb, n, h, w)

    # --- bilinear upsample to the low-level spatial size (separable) ---
    up = bilinear_resize(aspp_out, hl, wl)                             # (n, hl, wl, c)

    # --- final 3x3 conv over concat([up, low]) without materialising the concat ---
    w_head = params["head_w"]
    out = conv2d_taps([up, low],
                      [w_head[:, :, :c, :], w_head[:, :, c:, :]],
                      params["head_b"], dilation=1, relu=False,
                      out_dtype=jnp.float32)                           # (n, hl, wl, ncls)
    return jnp.transpose(out, (0, 3, 1, 2))                            # back to NCHW


# ----------------------------------------------------------------------------------
# Deterministic synthetic parameters (BN folded into conv weight/bias).
# ----------------------------------------------------------------------------------
def init_params(key, cin_aspp, cfeat, cout, nclass):
    ks = jax.random.split(key, 16)

    def w(k, shape, fan_in):
        return jax.random.normal(k, shape, jnp.float32) / jnp.sqrt(float(fan_in))

    params = {
        "aspp_w0": w(ks[0], (1, 1, cin_aspp, cout), cin_aspp),
        "aspp_b0": 0.1 * jax.random.normal(ks[1], (cout,), jnp.float32),
        "aspp_w1": w(ks[2], (3, 3, cin_aspp, cout), 9 * cin_aspp),
        "aspp_b1": 0.1 * jax.random.normal(ks[3], (cout,), jnp.float32),
        "aspp_w2": w(ks[4], (3, 3, cin_aspp, cout), 9 * cin_aspp),
        "aspp_b2": 0.1 * jax.random.normal(ks[5], (cout,), jnp.float32),
        "aspp_w3": w(ks[6], (3, 3, cin_aspp, cout), 9 * cin_aspp),
        "aspp_b3": 0.1 * jax.random.normal(ks[7], (cout,), jnp.float32),
        "aspp_wpool": w(ks[8], (cin_aspp, cout), cin_aspp),
        "aspp_bpool": 0.1 * jax.random.normal(ks[9], (cout,), jnp.float32),
        "aspp_wproj": w(ks[10], (1, 1, 5 * cout, cout), 5 * cout),
        "aspp_bproj": 0.1 * jax.random.normal(ks[11], (cout,), jnp.float32),
        "head_w": w(ks[12], (3, 3, cout + cfeat, nclass), 9 * (cout + cfeat)),
        "head_b": 0.1 * jax.random.normal(ks[13], (nclass,), jnp.float32),
    }
    return params


# ----------------------------------------------------------------------------------
# Pure-JAX reference (same math, XLA convolutions in f32/HIGHEST) for correctness.
# ----------------------------------------------------------------------------------
def reference(x_nchw, low_nchw, params, out_channels):
    x = jnp.transpose(x_nchw, (0, 2, 3, 1)).astype(jnp.float32)
    low = jnp.transpose(low_nchw, (0, 2, 3, 1)).astype(jnp.float32)
    hp = jax.lax.Precision.HIGHEST

    def conv(xx, wgt, b, d, relu):
        pad = d * (wgt.shape[0] // 2)
        y = jax.lax.conv_general_dilated(
            xx, wgt, (1, 1), ((pad, pad), (pad, pad)), rhs_dilation=(d, d),
            dimension_numbers=("NHWC", "HWIO", "NHWC"), precision=hp) + b
        return jnp.maximum(y, 0.0) if relu else y

    b0 = conv(x, params["aspp_w0"], params["aspp_b0"], 1, True)
    b1 = conv(x, params["aspp_w1"], params["aspp_b1"], 12, True)
    b2 = conv(x, params["aspp_w2"], params["aspp_b2"], 24, True)
    b3 = conv(x, params["aspp_w3"], params["aspp_b3"], 36, True)
    n, h, w, _ = x.shape
    pooled = jnp.mean(x, axis=(1, 2))
    pooled = jnp.maximum(
        jnp.matmul(pooled, params["aspp_wpool"], precision=hp) + params["aspp_bpool"], 0.0)
    b4 = jnp.broadcast_to(pooled[:, None, None, :], (n, h, w, out_channels))
    cat = jnp.concatenate([b0, b1, b2, b3, b4], axis=-1)
    aspp_out = conv(cat, params["aspp_wproj"], params["aspp_bproj"], 1, True)
    hl, wl = low.shape[1], low.shape[2]
    rh, rw = bilinear_matrix(h, hl), bilinear_matrix(w, wl)
    tmp = jnp.einsum("Oh,nhwc->nOwc", rh, aspp_out, precision=hp)
    up = jnp.einsum("Ow,nhwc->nhOc", rw, tmp, precision=hp)
    feat = jnp.concatenate([up, low], axis=-1)
    out = conv(feat, params["head_w"], params["head_b"], 1, False)
    return jnp.transpose(out, (0, 3, 1, 2))


if __name__ == "__main__":
    key = jax.random.PRNGKey(0)
    k_x, k_low, k_p = jax.random.split(key, 3)

    # Small shapes consistent with the module: x is the high-level feature map
    # (small spatial), low_level_features is larger (DeepLabV3+ convention).
    batch = 2
    aspp_in_channels = 8
    features_channels = 6
    out_channels = 16
    num_classes = 8

    x = jax.random.normal(k_x, (batch, aspp_in_channels, 8, 8), jnp.float32)          # NCHW
    low = jax.random.normal(k_low, (batch, features_channels, 16, 16), jnp.float32)   # NCHW
    params = init_params(k_p, aspp_in_channels, features_channels, out_channels, num_classes)

    out = deeplab_plus_head(x, low, params, out_channels)
    out = jax.block_until_ready(out)
    assert out.shape == (batch, num_classes, 16, 16), out.shape

    ref = jax.block_until_ready(reference(x, low, params, out_channels))
    err = jnp.abs(out - ref)
    # Tolerance accounts for bf16 MXU operands (f32 accumulation) vs. the f32
    # HIGHEST-precision reference.
    assert jnp.allclose(out, ref, atol=5e-2, rtol=5e-2), float(jnp.max(err))
    assert float(jnp.mean(err)) < 1.5e-2, float(jnp.mean(err))

    print("KERNEL_OK")
</pallas_src>

<mosaic_0001>
module attributes {stable_mosaic.version = 11 : i64} {
  func.func @_mm_bias_act_kernel(%arg0: i32, %arg1: i32, %arg2: memref<128x8xbf16, #tpu.memory_space<vmem>>, %arg3: memref<8x128xbf16, #tpu.memory_space<vmem>>, %arg4: memref<1x128xf32, #tpu.memory_space<vmem>>, %arg5: memref<128x128xbf16, #tpu.memory_space<vmem>>, %arg6: memref<128x128xf32, #tpu.memory_space<vmem>>) attributes {dimension_semantics = [#tpu.dimension_semantics<parallel>, #tpu.dimension_semantics<arbitrary>], iteration_bounds = array<i64: 1, 1>, scalar_prefetch = 0 : i64, scratch_operands = 1 : i64, tpu.core_type = #tpu.core_type<tc>, window_params = [{transform_indices = @transform_0, window_bounds = array<i64: 128, 8>}, {transform_indices = @transform_1, window_bounds = array<i64: 8, 128>}, {pipeline_mode = #tpu.pipeline_mode<synchronous>, transform_indices = @transform_2, window_bounds = array<i64: 1, 128>}, {transform_indices = @transform_3, window_bounds = array<i64: 128, 128>}]} {
    %c0_i32 = arith.constant 0 : i32
    %0 = arith.cmpi eq, %arg1, %c0_i32 : i32
    %1 = arith.extui %0 : i1 to i32
    %c0_i32_0 = arith.constant 0 : i32
    %2 = arith.cmpi ne, %1, %c0_i32_0 : i32
    scf.if %2 {
      %cst_10 = arith.constant 0.000000e+00 : f32
      %12 = vector.broadcast %cst_10 : f32 to vector<128x128xf32>
      %c0_11 = arith.constant 0 : index
      %c0_12 = arith.constant 0 : index
      %13 = vector.load %arg6[%c0_11, %c0_12] : memref<128x128xf32, #tpu.memory_space<vmem>>, vector<128x128xf32>
      tpu.vector_store %arg6[%c0_11, %c0_12], %12 {strides = array<i32>} : memref<128x128xf32, #tpu.memory_space<vmem>>, vector<128x128xf32>,
    } else {
    }
    %c0 = arith.constant 0 : index
    %c0_1 = arith.constant 0 : index
    %3 = vector.load %arg6[%c0, %c0_1] : memref<128x128xf32, #tpu.memory_space<vmem>>, vector<128x128xf32>
    %c0_2 = arith.constant 0 : index
    %c0_3 = arith.constant 0 : index
    %4 = vector.load %arg2[%c0_2, %c0_3] : memref<128x8xbf16, #tpu.memory_space<vmem>>, vector<128x8xbf16>
    %c0_4 = arith.constant 0 : index
    %c0_5 = arith.constant 0 : index
    %5 = vector.load %arg3[%c0_4, %c0_5] : memref<8x128xbf16, #tpu.memory_space<vmem>>, vector<8x128xbf16>
    %cst = arith.constant dense<0.000000e+00> : vector<128x128xf32>
    %6 = tpu.matmul %4, %5, %cst {dimension_numbers = #tpu.dot_dimension_numbers<[1], [0], [0], [1], [0, 0, 1, 1], [], []>} : vector<128x8xbf16>, vector<8x128xbf16>, vector<128x128xf32> -> vector<128x128xf32>
    %7 = arith.addf %3, %6 : vector<128x128xf32>
    %c0_6 = arith.constant 0 : index
    %c0_7 = arith.constant 0 : index
    %8 = vector.load %arg6[%c0_6, %c0_7] : memref<128x128xf32, #tpu.memory_space<vmem>>, vector<128x128xf32>
    tpu.vector_store %arg6[%c0_6, %c0_7], %7 {strides = array<i32>} : memref<128x128xf32, #tpu.memory_space<vmem>>, vector<128x128xf32>,
    %c0_i32_8 = arith.constant 0 : i32
    %9 = arith.cmpi eq, %arg1, %c0_i32_8 : i32
    %10 = arith.extui %9 : i1 to i32
    %c0_i32_9 = arith.constant 0 : i32
    %11 = arith.cmpi ne, %10, %c0_i32_9 : i32
    scf.if %11 {
      %c0_10 = arith.constant 0 : index
      %c0_11 = arith.constant 0 : index
      %12 = vector.load %arg6[%c0_10, %c0_11] : memref<128x128xf32, #tpu.memory_space<vmem>>, vector<128x128xf32>
      %c0_12 = arith.constant 0 : index
      %c0_13 = arith.constant 0 : index
      %13 = vector.load %arg4[%c0_12, %c0_13] : memref<1x128xf32, #tpu.memory_space<vmem>>, vector<1x128xf32>
      %14 = vector.broadcast %13 : vector<1x128xf32> to vector<128x128xf32>
      %15 = arith.addf %12, %14 : vector<128x128xf32>
      %cst_14 = arith.constant 0.000000e+00 : f32
      %16 = vector.broadcast %cst_14 : f32 to vector<128x128xf32>
      %17 = arith.maximumf %15, %16 : vector<128x128xf32>
      %18 = arith.truncf %17 : vector<128x128xf32> to vector<128x128xbf16>
      %c0_15 = arith.constant 0 : index
      %c0_16 = arith.constant 0 : index
      %19 = vector.load %arg5[%c0_15, %c0_16] : memref<128x128xbf16, #tpu.memory_space<vmem>>, vector<128x128xbf16>
      tpu.vector_store %arg5[%c0_15, %c0_16], %18 {strides = array<i32>} : memref<128x128xbf16, #tpu.memory_space<vmem>>, vector<128x128xbf16>,
    } else {
    }
    return
  }
  func.func @transform_0(%arg0: i32, %arg1: i32) -> (i32, i32) {
    %c0_i32 = arith.constant 0 : i32
    return %arg0, %arg1 : i32, i32
  }
  func.func @transform_1(%arg0: i32, %arg1: i32) -> (i32, i32) {
    %c0_i32 = arith.constant 0 : i32
    %c0_i32_0 = arith.constant 0 : i32
    return %arg1, %c0_i32 : i32, i32
  }
  func.func @transform_2(%arg0: i32, %arg1: i32) -> (i32, i32) {
    %c0_i32 = arith.constant 0 : i32
    %c0_i32_0 = arith.constant 0 : i32
    %c0_i32_1 = arith.constant 0 : i32
    return %c0_i32, %c0_i32_0 : i32, i32
  }
  func.func @transform_3(%arg0: i32, %arg1: i32) -> (i32, i32) {
    %c0_i32 = arith.constant 0 : i32
    %c0_i32_0 = arith.constant 0 : i32
    return %arg0, %c0_i32 : i32, i32
  }
}

</mosaic_0001>

<llo_original>
// kernel: tpu_custom_call.1
$region0: #{tpu_custom_call.1}
  #allocation0 [shape = 'u32[]', space=smem, size = 0x4, offset = 0x4, fixed_abs, tag = 'smem constant byte address 0x4 - core index']
  #allocation1 [shape = 'u32[144,128]{1,0:T(1,128)}', space=vmem, size = 0x12000, scoped, tag = 'internal scratch']
  #allocation2 [shape = 'f32[128,128]{1,0:T(8,128)}', space=vmem, size = 0x10000, scoped, tag = 'scratch operand']
  %s0 = inlined_call_operand.vmem [shape: bf16[128,8], index: 0, kind: input, shape index: {}]
  %s1 = inlined_call_operand.vmem [shape: bf16[8,128], index: 1, kind: input, shape index: {}]
  %s2 = inlined_call_operand.vmem [shape: f32[1,128], index: 2, kind: input, shape index: {}]
  %s3 = inlined_call_operand.hbm [shape: bf16[128,128], index: 3, kind: output, shape index: {}]
  %s4 = sld [smem:[#allocation0]]
  $region30: #{tpu_custom_call.1} parent=0
    _
  %s6 = ssub.s32 1, %s4
  %s7 = scalar_select 0, %s6, %s4
  $region1: #{tpu_custom_call.1} parent=0
    #allocation3 [shape = 'u8[32768]{0}', space=vmem, size = 0x8000, scoped, tag = 'output window, operand 0, single buffered']
    #allocation4 [shape = 's32[1]{0}', space=sflag, size = 0x4, scoped, tag = 'scoped memory for tpu_custom_call.1']
    %8 = vsyncpa [#allocation4], 0
    // Predicated region
    $region2: #{tpu_custom_call.1} parent=1 // pred_check
      _
    $region3: #{tpu_custom_call.1} parent=1 // pred_check_branch
      %10 = sbr.rel (0) target = $region5
    $region4: #{tpu_custom_call.1} parent=1 // pred_region
      _
    $region5: #{tpu_custom_call.1} parent=1 // pred_fallthru
      _
    // Predicated region
    $region6: #{tpu_custom_call.1} parent=1 // pred_check
      _
    $region7: #{tpu_custom_call.1} parent=1 // pred_check_branch
      %12 = sbr.rel (0) target = $region9
    $region8: #{tpu_custom_call.1} parent=1 // pred_region
      _
    $region9: #{tpu_custom_call.1} parent=1 // pred_fallthru
      _
    // Predicated region
    $region10: #{tpu_custom_call.1} parent=1 // pred_check
      _
    $region11: #{tpu_custom_call.1} parent=1 // pred_check_branch
      %14 = sbr.rel (0) target = $region13
    $region12: #{tpu_custom_call.1} parent=1 // pred_region
      _
    $region13: #{tpu_custom_call.1} parent=1 // pred_fallthru
      _
    %p16 = scmp.eq.s32.totalorder 0, 0
    // Predicated region
    $region14: #{tpu_custom_call.1} parent=1 // pred_check
      %p17 = pneg %p16
    $region15: #{tpu_custom_call.1} parent=1 // pred_check_branch
      %19 = sbr.rel (%p17) target = $region17
    $region16: #{tpu_custom_call.1} parent=1 // pred_region
      %20 = vst [vmem:[#allocation2] sm:$0xff] 0.0
      %21 = vst [vmem:[#allocation2 + $0x8] sm:$0xff] 0.0
      %22 = vst [vmem:[#allocation2 + $0x10] sm:$0xff] 0.0
      %23 = vst [vmem:[#allocation2 + $0x18] sm:$0xff] 0.0
      %24 = vst [vmem:[#allocation2 + $0x20] sm:$0xff] 0.0
      %25 = vst [vmem:[#allocation2 + $0x28] sm:$0xff] 0.0
      %26 = vst [vmem:[#allocation2 + $0x30] sm:$0xff] 0.0
      %27 = vst [vmem:[#allocation2 + $0x38] sm:$0xff] 0.0
      %28 = vst [vmem:[#allocation2 + $0x40] sm:$0xff] 0.0
      %29 = vst [vmem:[#allocation2 + $0x48] sm:$0xff] 0.0
      %30 = vst [vmem:[#allocation2 + $0x50] sm:$0xff] 0.0
      %31 = vst [vmem:[#allocation2 + $0x58] sm:$0xff] 0.0
      %32 = vst [vmem:[#allocation2 + $0x60] sm:$0xff] 0.0
      %33 = vst [vmem:[#allocation2 + $0x68] sm:$0xff] 0.0
      %34 = vst [vmem:[#allocation2 + $0x70] sm:$0xff] 0.0
      %35 = vst [vmem:[#allocation2 + $0x78] sm:$0xff] 0.0
    $region17: #{tpu_custom_call.1} parent=1 // pred_fallthru
      _
    %v36 = vld [vmem:[#allocation2] sm:$0xff]
    %v37 = vld [vmem:[#allocation2 + $0x8] sm:$0xff]
    %v38 = vld [vmem:[#allocation2 + $0x10] sm:$0xff]
    %v39 = vld [vmem:[#allocation2 + $0x18] sm:$0xff]
    %v40 = vld [vmem:[#allocation2 + $0x20] sm:$0xff]
    %v41 = vld [vmem:[#allocation2 + $0x28] sm:$0xff]
    %v42 = vld [vmem:[#allocation2 + $0x30] sm:$0xff]
    %v43 = vld [vmem:[#allocation2 + $0x38] sm:$0xff]
    %v44 = vld [vmem:[#allocation2 + $0x40] sm:$0xff]
    %v45 = vld [vmem:[#allocation2 + $0x48] sm:$0xff]
    %v46 = vld [vmem:[#allocation2 + $0x50] sm:$0xff]
    %v47 = vld [vmem:[#allocation2 + $0x58] sm:$0xff]
    %v48 = vld [vmem:[#allocation2 + $0x60] sm:$0xff]
    %v49 = vld [vmem:[#allocation2 + $0x68] sm:$0xff]
    %v50 = vld [vmem:[#allocation2 + $0x70] sm:$0xff]
    %v51 = vld [vmem:[#allocation2 + $0x78] sm:$0xff]
    %v52 = vld [vmem:[%s0] sm:$0xf]
    %v53 = vld [vmem:[%s0 + $0x4] sm:$0xf]
    %v54 = vld [vmem:[%s0 + $0x8] sm:$0xf]
    %v55 = vld [vmem:[%s0 + $0xc] sm:$0xf]
    %v56 = vld [vmem:[%s0 + $0x10] sm:$0xf]
    %v57 = vld [vmem:[%s0 + $0x14] sm:$0xf]
    %v58 = vld [vmem:[%s0 + $0x18] sm:$0xf]
    %v59 = vld [vmem:[%s0 + $0x1c] sm:$0xf]
    %v60 = vld [vmem:[%s0 + $0x20] sm:$0xf]
    %v61 = vld [vmem:[%s0 + $0x24] sm:$0xf]
    %v62 = vld [vmem:[%s0 + $0x28] sm:$0xf]
    %v63 = vld [vmem:[%s0 + $0x2c] sm:$0xf]
    %v64 = vld [vmem:[%s0 + $0x30] sm:$0xf]
    %v65 = vld [vmem:[%s0 + $0x34] sm:$0xf]
    %v66 = vld [vmem:[%s0 + $0x38] sm:$0xf]
    %v67 = vld [vmem:[%s0 + $0x3c] sm:$0xf]
    %v68 = vld [vmem:[%s1] sm:$0xf]
    %v85 = vunpack.c.l.b16 %v52
    %v86 = vunpack.c.l.b16 %v53
    %v87 = vunpack.c.l.b16 %v54
    %v88 = vunpack.c.l.b16 %v55
    %v89 = vunpack.c.l.b16 %v56
    %v90 = vunpack.c.l.b16 %v57
    %v91 = vunpack.c.l.b16 %v58
    %v92 = vunpack.c.l.b16 %v59
    %v93 = vunpack.c.l.b16 %v60
    %v94 = vunpack.c.l.b16 %v61
    %v95 = vunpack.c.l.b16 %v62
    %v96 = vunpack.c.l.b16 %v63
    %v97 = vunpack.c.l.b16 %v64
    %v98 = vunpack.c.l.b16 %v65
    %v99 = vunpack.c.l.b16 %v66
    %v100 = vunpack.c.l.b16 %v67
    %v101 = vpack.c.b16 %v86, %v85
    %v102 = vpack.c.b16 %v88, %v87
    %v103 = vpack.c.b16 %v90, %v89
    %v104 = vpack.c.b16 %v92, %v91
    %v105 = vpack.c.b16 %v94, %v93
    %v106 = vpack.c.b16 %v96, %v95
    %v107 = vpack.c.b16 %v98, %v97
    %v108 = vpack.c.b16 %v100, %v99
    %vm109 = vcmask 64512
    %v111 = vsel %vm109, %v101, 0
    %v114 = vsel %vm109, %v102, 0
    %v117 = vsel %vm109, %v103, 0
    %v120 = vsel %vm109, %v104, 0
    %v123 = vsel %vm109, %v105, 0
    %v126 = vsel %vm109, %v106, 0
    %v129 = vsel %vm109, %v107, 0
    %v132 = vsel %vm109, %v108, 0
    %vm134 = vcmask 1043456
    %v136 = vsel %vm134, %v68, 0
    %138 = vmatprep.subr.bf16.mxu0 0
    %139 = vmatpush1.bf16.msra.mxu0 0
    %140 = vmatprep.subr.bf16.mxu0 0
    %141 = vmatpush1.bf16.msra.mxu0 0
    %142 = vmatprep.subr.bf16.mxu0 0
    %143 = vmatpush1.bf16.msra.mxu0 0
    %144 = vmatprep.subr.bf16.mxu0 0
    %145 = vmatpush1.bf16.msra.mxu0 0
    %146 = vmatprep.subr.bf16.mxu0 0
    %147 = vmatpush1.bf16.msra.mxu0 0
    %148 = vmatprep.subr.bf16.mxu0 0
    %149 = vmatpush1.bf16.msra.mxu0 0
    %150 = vmatprep.subr.bf16.mxu0 0
    %151 = vmatpush1.bf16.msra.mxu0 0
    %152 = vmatprep.subr.bf16.mxu0 0
    %153 = vmatpush1.bf16.msra.mxu0 %v136
    %154 = vmatprep.subr.bf16.mxu0 0
    %155 = vmatpush2.bf16.msra.mxu0 0
    %156 = vmatprep.subr.bf16.mxu0 0
    %157 = vmatpush2.bf16.msra.mxu0 0
    %158 = vmatprep.subr.bf16.mxu0 0
    %159 = vmatpush2.bf16.msra.mxu0 0
    %160 = vmatprep.subr.bf16.mxu0 0
    %161 = vmatpush2.bf16.msra.mxu0 0
    %162 = vmatprep.subr.bf16.mxu0 0
    %163 = vmatpush2.bf16.msra.mxu0 0
    %164 = vmatprep.subr.bf16.mxu0 0
    %165 = vmatpush2.bf16.msra.mxu0 0
    %166 = vmatprep.subr.bf16.mxu0 0
    %167 = vmatpush2.bf16.msra.mxu0 0
    %168 = vmatprep.subr.bf16.mxu0 0
    %169 = vmatpush2.bf16.msra.mxu0 0
    %170 = vmatprep.mubr.bf16.mxu0 0
    %171 = vmatmul.mubr.bf16.gmra.mxu0 %v111
    %v172 = vpop.f32.mrf.mxu0
    %v173 = vadd.f32 0.0, %v172
    %v174 = vpop.f32.mrf.mxu0
    %v175 = vpop.f32.mrf.mxu0
    %v176 = vadd.f32 0.0, %v175
    %v177 = vpop.f32.mrf.mxu0
    %178 = vmatprep.mubr.bf16.mxu0 0
    %179 = vmatmul.mubr.bf16.gmra.mxu0 %v114
    %v180 = vpop.f32.mrf.mxu0
    %v181 = vadd.f32 0.0, %v180
    %v182 = vpop.f32.mrf.mxu0
    %v183 = vpop.f32.mrf.mxu0
    %v184 = vadd.f32 0.0, %v183
    %v185 = vpop.f32.mrf.mxu0
    %186 = vmatprep.mubr.bf16.mxu0 0
    %187 = vmatmul.mubr.bf16.gmra.mxu0 %v117
    %v188 = vpop.f32.mrf.mxu0
    %v189 = vadd.f32 0.0, %v188
    %v190 = vpop.f32.mrf.mxu0
    %v191 = vpop.f32.mrf.mxu0
    %v192 = vadd.f32 0.0, %v191
    %v193 = vpop.f32.mrf.mxu0
    %194 = vmatprep.mubr.bf16.mxu0 0
    %195 = vmatmul.mubr.bf16.gmra.mxu0 %v120
    %v196 = vpop.f32.mrf.mxu0
    %v197 = vadd.f32 0.0, %v196
    %v198 = vpop.f32.mrf.mxu0
    %v199 = vpop.f32.mrf.mxu0
    %v200 = vadd.f32 0.0, %v199
    %v201 = vpop.f32.mrf.mxu0
    %202 = vmatprep.mubr.bf16.mxu0 0
    %203 = vmatmul.mubr.bf16.gmra.mxu0 %v123
    %v204 = vpop.f32.mrf.mxu0
    %v205 = vadd.f32 0.0, %v204
    %v206 = vpop.f32.mrf.mxu0
    %v207 = vpop.f32.mrf.mxu0
    %v208 = vadd.f32 0.0, %v207
    %v209 = vpop.f32.mrf.mxu0
    %210 = vmatprep.mubr.bf16.mxu0 0
    %211 = vmatmul.mubr.bf16.gmra.mxu0 %v126
    %v212 = vpop.f32.mrf.mxu0
    %v213 = vadd.f32 0.0, %v212
    %v214 = vpop.f32.mrf.mxu0
    %v215 = vpop.f32.mrf.mxu0
    %v216 = vadd.f32 0.0, %v215
    %v217 = vpop.f32.mrf.mxu0
    %218 = vmatprep.mubr.bf16.mxu0 0
    %219 = vmatmul.mubr.bf16.gmra.mxu0 %v129
    %v220 = vpop.f32.mrf.mxu0
    %v221 = vadd.f32 0.0, %v220
    %v222 = vpop.f32.mrf.mxu0
    %v223 = vpop.f32.mrf.mxu0
    %v224 = vadd.f32 0.0, %v223
    %v225 = vpop.f32.mrf.mxu0
    %226 = vmatprep.mubr.bf16.mxu0 0
    %227 = vmatmul.mubr.bf16.gmra.mxu0 %v132
    %v228 = vpop.f32.mrf.mxu0
    %v229 = vadd.f32 0.0, %v228
    %v230 = vpop.f32.mrf.mxu0
    %v231 = vpop.f32.mrf.mxu0
    %v232 = vadd.f32 0.0, %v231
    %v233 = vpop.f32.mrf.mxu0
    %234 = vdwg.mxu0
    %v235 = vadd.f32 %v36, %v173
    %v236 = vadd.f32 %v37, %v176
    %v237 = vadd.f32 %v38, %v181
    %v238 = vadd.f32 %v39, %v184
    %v239 = vadd.f32 %v40, %v189
    %v240 = vadd.f32 %v41, %v192
    %v241 = vadd.f32 %v42, %v197
    %v242 = vadd.f32 %v43, %v200
    %v243 = vadd.f32 %v44, %v205
    %v244 = vadd.f32 %v45, %v208
    %v245 = vadd.f32 %v46, %v213
    %v246 = vadd.f32 %v47, %v216
    %v247 = vadd.f32 %v48, %v221
    %v248 = vadd.f32 %v49, %v224
    %v249 = vadd.f32 %v50, %v229
    %v250 = vadd.f32 %v51, %v232
    %251 = vst [vmem:[#allocation2] sm:$0xff] %v235
    %252 = vst [vmem:[#allocation2 + $0x8] sm:$0xff] %v236
    %253 = vst [vmem:[#allocation2 + $0x10] sm:$0xff] %v237
    %254 = vst [vmem:[#allocation2 + $0x18] sm:$0xff] %v238
    %255 = vst [vmem:[#allocation2 + $0x20] sm:$0xff] %v239
    %256 = vst [vmem:[#allocation2 + $0x28] sm:$0xff] %v240
    %257 = vst [vmem:[#allocation2 + $0x30] sm:$0xff] %v241
    %258 = vst [vmem:[#allocation2 + $0x38] sm:$0xff] %v242
    %259 = vst [vmem:[#allocation2 + $0x40] sm:$0xff] %v243
    %260 = vst [vmem:[#allocation2 + $0x48] sm:$0xff] %v244
    %261 = vst [vmem:[#allocation2 + $0x50] sm:$0xff] %v245
    %262 = vst [vmem:[#allocation2 + $0x58] sm:$0xff] %v246
    %263 = vst [vmem:[#allocation2 + $0x60] sm:$0xff] %v247
    %264 = vst [vmem:[#allocation2 + $0x68] sm:$0xff] %v248
    %265 = vst [vmem:[#allocation2 + $0x70] sm:$0xff] %v249
    %266 = vst [vmem:[#allocation2 + $0x78] sm:$0xff] %v250
    // Predicated region
    $region18: #{tpu_custom_call.1} parent=1 // pred_check
      %p267 = pneg %p16
    $region19: #{tpu_custom_call.1} parent=1 // pred_check_branch
      %269 = sbr.rel (%p267) target = $region21
    $region20: #{tpu_custom_call.1} parent=1 // pred_region
      %v270 = vld [vmem:[#allocation2] sm:$0xff]
      %v271 = vld [vmem:[#allocation2 + $0x8] sm:$0xff]
      %v272 = vld [vmem:[#allocation2 + $0x10] sm:$0xff]
      %v273 = vld [vmem:[#allocation2 + $0x18] sm:$0xff]
      %v274 = vld [vmem:[#allocation2 + $0x20] sm:$0xff]
      %v275 = vld [vmem:[#allocation2 + $0x28] sm:$0xff]
      %v276 = vld [vmem:[#allocation2 + $0x30] sm:$0xff]
      %v277 = vld [vmem:[#allocation2 + $0x38] sm:$0xff]
      %v278 = vld [vmem:[#allocation2 + $0x40] sm:$0xff]
      %v279 = vld [vmem:[#allocation2 + $0x48] sm:$0xff]
      %v280 = vld [vmem:[#allocation2 + $0x50] sm:$0xff]
      %v281 = vld [vmem:[#allocation2 + $0x58] sm:$0xff]
      %v282 = vld [vmem:[#allocation2 + $0x60] sm:$0xff]
      %v283 = vld [vmem:[#allocation2 + $0x68] sm:$0xff]
      %v284 = vld [vmem:[#allocation2 + $0x70] sm:$0xff]
      %v285 = vld [vmem:[#allocation2 + $0x78] sm:$0xff]
      %v286 = vld [vmem:[%s2] sm:$0x1]
      %v288 = vlaneseq
      %v289 = vshrl.u32 %v288, 7
      %v290 = vsub.s32 0, %v289
      %v291 = vrot.slane %v286, %v290
      %v293 = vadd.f32 %v270, %v291
      %v294 = vadd.f32 %v271, %v291
      %v295 = vadd.f32 %v272, %v291
      %v296 = vadd.f32 %v273, %v291
      %v297 = vadd.f32 %v274, %v291
      %v298 = vadd.f32 %v275, %v291
      %v299 = vadd.f32 %v276, %v291
      %v300 = vadd.f32 %v277, %v291
      %v301 = vadd.f32 %v278, %v291
      %v302 = vadd.f32 %v279, %v291
      %v303 = vadd.f32 %v280, %v291
      %v304 = vadd.f32 %v281, %v291
      %v305 = vadd.f32 %v282, %v291
      %v306 = vadd.f32 %v283, %v291
      %v307 = vadd.f32 %v284, %v291
      %v308 = vadd.f32 %v285, %v291
      %v309 = vmax.f32 %v293, 0.0
      %v310 = vmax.f32 %v294, 0.0
      %v311 = vmax.f32 %v295, 0.0
      %v312 = vmax.f32 %v296, 0.0
      %v313 = vmax.f32 %v297, 0.0
      %v314 = vmax.f32 %v298, 0.0
      %v315 = vmax.f32 %v299, 0.0
      %v316 = vmax.f32 %v300, 0.0
      %v317 = vmax.f32 %v301, 0.0
      %v318 = vmax.f32 %v302, 0.0
      %v319 = vmax.f32 %v303, 0.0
      %v320 = vmax.f32 %v304, 0.0
      %v321 = vmax.f32 %v305, 0.0
      %v322 = vmax.f32 %v306, 0.0
      %v323 = vmax.f32 %v307, 0.0
      %v324 = vmax.f32 %v308, 0.0
      %v325 = vpack.c.bf16 %v310, %v309
      %v326 = vpack.c.bf16 %v312, %v311
      %v327 = vpack.c.bf16 %v314, %v313
      %v328 = vpack.c.bf16 %v316, %v315
      %v329 = vpack.c.bf16 %v318, %v317
      %v330 = vpack.c.bf16 %v320, %v319
      %v331 = vpack.c.bf16 %v322, %v321
      %v332 = vpack.c.bf16 %v324, %v323
      %v341 = vunpack.c.l.b16 %v325
      %v342 = vunpack.c.h.b16 %v325
      %v343 = vunpack.c.l.b16 %v326
      %v344 = vunpack.c.h.b16 %v326
      %v345 = vunpack.c.l.b16 %v327
      %v346 = vunpack.c.h.b16 %v327
      %v347 = vunpack.c.l.b16 %v328
      %v348 = vunpack.c.h.b16 %v328
      %v349 = vunpack.c.l.b16 %v329
      %v350 = vunpack.c.h.b16 %v329
      %v351 = vunpack.c.l.b16 %v330
      %v352 = vunpack.c.h.b16 %v330
      %v353 = vunpack.c.l.b16 %v331
      %v354 = vunpack.c.h.b16 %v331
      %v355 = vunpack.c.l.b16 %v332
      %v356 = vunpack.c.h.b16 %v332
      %v357 = vpack.c.b16 %v341, %v341
      %v358 = vpack.c.b16 %v342, %v342
      %v359 = vpack.c.b16 %v343, %v343
      %v360 = vpack.c.b16 %v344, %v344
      %v361 = vpack.c.b16 %v345, %v345
      %v362 = vpack.c.b16 %v346, %v346
      %v363 = vpack.c.b16 %v347, %v347
      %v364 = vpack.c.b16 %v348, %v348
      %v365 = vpack.c.b16 %v349, %v349
      %v366 = vpack.c.b16 %v350, %v350
      %v367 = vpack.c.b16 %v351, %v351
      %v368 = vpack.c.b16 %v352, %v352
      %v369 = vpack.c.b16 %v353, %v353
      %v370 = vpack.c.b16 %v354, %v354
      %v371 = vpack.c.b16 %v355, %v355
      %v372 = vpack.c.b16 %v356, %v356
      %389 = vst [vmem:[#allocation3] sm:$0xf] %v357
      %390 = vst [vmem:[#allocation3 + $0x4] sm:$0xf] %v358
      %391 = vst [vmem:[#allocation3 + $0x8] sm:$0xf] %v359
      %392 = vst [vmem:[#allocation3 + $0xc] sm:$0xf] %v360
      %393 = vst [vmem:[#allocation3 + $0x10] sm:$0xf] %v361
      %394 = vst [vmem:[#allocation3 + $0x14] sm:$0xf] %v362
      %395 = vst [vmem:[#allocation3 + $0x18] sm:$0xf] %v363
      %396 = vst [vmem:[#allocation3 + $0x1c] sm:$0xf] %v364
      %397 = vst [vmem:[#allocation3 + $0x20] sm:$0xf] %v365
      %398 = vst [vmem:[#allocation3 + $0x24] sm:$0xf] %v366
      %399 = vst [vmem:[#allocation3 + $0x28] sm:$0xf] %v367
      %400 = vst [vmem:[#allocation3 + $0x2c] sm:$0xf] %v368
      %401 = vst [vmem:[#allocation3 + $0x30] sm:$0xf] %v369
      %402 = vst [vmem:[#allocation3 + $0x34] sm:$0xf] %v370
      %403 = vst [vmem:[#allocation3 + $0x38] sm:$0xf] %v371
      %404 = vst [vmem:[#allocation3 + $0x3c] sm:$0xf] %v372
    $region21: #{tpu_custom_call.1} parent=1 // pred_fallthru
      _
    // Predicated region
    $region22: #{tpu_custom_call.1} parent=1 // pred_check
      _
    $region23: #{tpu_custom_call.1} parent=1 // pred_check_branch
      %406 = sbr.rel (0) target = $region25
    $region24: #{tpu_custom_call.1} parent=1 // pred_region
      %s408 = ssub.s32 1024, 1024
      %409 = vsyncadd [#allocation4], %s408
      %s410 = sshll.u32 [#allocation3], 4
      %s411 = int_to_ptr.vmem [resolvable:$true] %s410
      %416 = dma.vmem_to_hbm [thread:$0]  %s411, 1024, %s3, [#allocation4], 64, 64, 4
    $region25: #{tpu_custom_call.1} parent=1 // pred_fallthru
      _
    // Predicated region
    $region26: #{tpu_custom_call.1} parent=1 // pred_check
      _
    $region27: #{tpu_custom_call.1} parent=1 // pred_check_branch
      %418 = sbr.rel (0) target = $region29
    $region28: #{tpu_custom_call.1} parent=1 // pred_region
      %419 = dma.done [#allocation4], 1024
    $region29: #{tpu_custom_call.1} parent=1 // pred_fallthru
      _
    %420 = vsyncpa [#allocation4], 1

</llo_original>
